<compile_context>
chip_gen: v7x
topology: tpu7x:2x2x1
jax: 0.10.0
libtpu: 0.0.40
codegen_flags: <defaults>
</compile_context>

<pallas_src>
import jax
import jax.numpy as jnp
from jax import lax
from jax.experimental import pallas as pl
from jax.experimental.pallas import tpu as pltpu

_LANES = 128
_CHUNK_ROWS = 512  # rows folded per fori_loop step inside one block


def _num_tensorcores() -> int:
    """TensorCores per chip (2 on v7x, 1 on v5e/v6e). Defaults to 1 on failure."""
    try:
        info = pltpu.get_tpu_info()
        for name in (
            "num_cores",
            "core_count",
            "num_tensorcores",
            "tensorcore_count",
            "cores_per_chip",
        ):
            v = getattr(info, name, None)
            if isinstance(v, int) and 1 <= v <= 8:
                return v
    except Exception:
        pass
    try:
        v = getattr(jax.devices()[0], "num_cores", None)
        if isinstance(v, int) and 1 <= v <= 8:
            return v
    except Exception:
        pass
    return 1


def _make_mono_kernel(tm: int, chunk: int, lanes: int):
    """sum(relu(y - x)) over a full (tm, lanes) block into a resident (8, lanes) partial."""
    n_chunks = tm // chunk

    def kernel(x_ref, y_ref, out_ref):
        @pl.when(pl.program_id(1) == 0)
        def _init():
            out_ref[...] = jnp.zeros_like(out_ref)

        def body(c, acc):
            start = pl.multiple_of(c * chunk, chunk)
            xs = x_ref[pl.ds(start, chunk), :].astype(jnp.float32)
            ys = y_ref[pl.ds(start, chunk), :].astype(jnp.float32)
            r = jnp.maximum(ys - xs, 0.0)
            # Pure-VPU fold down to one vreg-shaped (8, lanes) partial; the lone
            # XLU cross-lane reduce happens once, outside the kernel.
            return acc + r.reshape(chunk // 8, 8, lanes).sum(axis=0)

        acc = lax.fori_loop(0, n_chunks, body, jnp.zeros((8, lanes), jnp.float32))
        out_ref[0] += acc

    return kernel


def monotonicity_loss(x, y, *, tile_rows: int = 8192, lanes: int = _LANES):
    """Pallas TPU implementation of mean(relu(y - x)). Returns scalar f32."""
    assert x.shape == y.shape, "x and y must have the same shape"
    n = int(x.size)
    if n == 0:
        return jnp.float32(0.0)

    xf = jnp.ravel(x)
    yf = jnp.ravel(y)

    itemsize = jnp.dtype(x.dtype).itemsize
    row_align = 8 * max(1, 4 // itemsize)  # f32: 8, bf16: 16, int8: 32 sublanes

    rows_full = n // lanes

    # Block rows: multiple of the sublane tiling; multiple of the in-kernel
    # chunk once large enough; never exceed the available row extent.
    tm = min(int(tile_rows), rows_full)
    if tm >= _CHUNK_ROWS:
        tm = (tm // _CHUNK_ROWS) * _CHUNK_ROWS
        chunk = _CHUNK_ROWS
    else:
        tm = (tm // row_align) * row_align
        chunk = tm

    if tm < row_align:
        # Too small for a kernel launch: pure JAX.
        d = yf.astype(jnp.float32) - xf.astype(jnp.float32)
        return jnp.sum(jnp.maximum(d, 0.0)) / jnp.float32(n)

    nb = rows_full // tm  # FULL blocks only -> mask-free hot loop
    num_partials = max(1, min(_num_tensorcores(), nb))
    nbc = nb // num_partials
    kernel_blocks = num_partials * nbc
    rows_kernel = kernel_blocks * tm
    kernel_elems = rows_kernel * lanes

    # Ragged tail (leftover full block when nb % num_partials != 0, the <tm-row
    # remainder, and the <128-lane remainder): one fused pure-JAX reduction.
    tail_sum = jnp.float32(0.0)
    if kernel_elems < n:
        tx = xf[kernel_elems:].astype(jnp.float32)
        ty = yf[kernel_elems:].astype(jnp.float32)
        tail_sum = jnp.sum(jnp.maximum(ty - tx, 0.0))

    x2 = xf[:kernel_elems].reshape(rows_kernel, lanes)
    y2 = yf[:kernel_elems].reshape(rows_kernel, lanes)

    # 2 inputs x 2 pipeline buffers x block, plus f32 chunk temps and slack.
    block_bytes = tm * lanes * itemsize
    vmem_limit = 4 * block_bytes + 8 * chunk * lanes * 4 + (2 << 20)
    vmem_limit = int(min(max(vmem_limit, 16 << 20), 48 << 20))

    in_map = lambda c, i: (c * nbc + i, 0)

    partials = pl.pallas_call(
        _make_mono_kernel(tm, chunk, lanes),
        out_shape=jax.ShapeDtypeStruct((num_partials, 8, lanes), jnp.float32),
        grid_spec=pltpu.PrefetchScalarGridSpec(
            num_scalar_prefetch=0,
            grid=(num_partials, nbc),
            in_specs=[
                pl.BlockSpec((tm, lanes), in_map),
                pl.BlockSpec((tm, lanes), in_map),
            ],
            out_specs=pl.BlockSpec((1, 8, lanes), lambda c, i: (c, 0, 0)),
        ),
        compiler_params=pltpu.CompilerParams(
            dimension_semantics=("parallel", "arbitrary"),
            vmem_limit_bytes=vmem_limit,
        ),
        cost_estimate=pl.CostEstimate(
            flops=3 * kernel_elems,
            transcendentals=0,
            bytes_accessed=2 * kernel_elems * itemsize + num_partials * 8 * lanes * 4,
        ),
    )(x2, y2)

    total = jnp.sum(partials) + tail_sum
    return total / jnp.float32(n)


if __name__ == "__main__":
    key = jax.random.PRNGKey(0)
    kx, ky = jax.random.split(key)

    # Small NCHW-like tensors, consistent with a generic (x, y) loss input.
    shape = (2, 4, 16, 16)
    x = jax.random.normal(kx, shape, dtype=jnp.float32)
    y = jax.random.normal(ky, shape, dtype=jnp.float32)

    loss = monotonicity_loss(x, y)
    loss = jax.block_until_ready(loss)

    ref = jnp.mean(jnp.maximum(y - x, 0.0))
    assert jnp.allclose(loss, ref, rtol=1e-5, atol=1e-6), (loss, ref)

    # Extra check: ragged shape exercising the pure-JAX tail path.
    shape2 = (3, 7, 33, 35)
    x2 = jax.random.normal(kx, shape2, dtype=jnp.float32)
    y2 = jax.random.normal(ky, shape2, dtype=jnp.float32)
    loss2 = jax.block_until_ready(monotonicity_loss(x2, y2))
    ref2 = jnp.mean(jnp.maximum(y2 - x2, 0.0))
    assert jnp.allclose(loss2, ref2, rtol=1e-5, atol=1e-6), (loss2, ref2)

    print("KERNEL_OK")
</pallas_src>

<mosaic_0001>
module attributes {stable_mosaic.version = 11 : i64} {
  func.func @kernel(%arg0: i32, %arg1: i32, %arg2: memref<16x128xf32, #tpu.memory_space<vmem>>, %arg3: memref<16x128xf32, #tpu.memory_space<vmem>>, %arg4: memref<1x8x128xf32, #tpu.memory_space<vmem>>) attributes {dimension_semantics = [#tpu.dimension_semantics<parallel>, #tpu.dimension_semantics<arbitrary>], iteration_bounds = array<i64: 1, 1>, scalar_prefetch = 0 : i64, scratch_operands = 0 : i64, tpu.core_type = #tpu.core_type<tc>, window_params = [{transform_indices = @transform_0, window_bounds = array<i64: 16, 128>}, {transform_indices = @transform_1, window_bounds = array<i64: 16, 128>}, {transform_indices = @transform_2, window_bounds = array<i64: 1, 8, 128>}]} {
    %c0_i32 = arith.constant 0 : i32
    %0 = arith.cmpi eq, %arg1, %c0_i32 : i32
    %1 = arith.extui %0 : i1 to i32
    %c0_i32_0 = arith.constant 0 : i32
    %2 = arith.cmpi ne, %1, %c0_i32_0 : i32
    scf.if %2 {
      %cst_11 = arith.constant 0.000000e+00 : f32
      %22 = vector.broadcast %cst_11 : f32 to vector<1x8x128xf32>
      %c0_12 = arith.constant 0 : index
      %c0_13 = arith.constant 0 : index
      %c0_14 = arith.constant 0 : index
      %23 = vector.load %arg4[%c0_12, %c0_13, %c0_14] : memref<1x8x128xf32, #tpu.memory_space<vmem>>, vector<1x8x128xf32>
      tpu.vector_store %arg4[%c0_12, %c0_13, %c0_14], %22 {strides = array<i32>} : memref<1x8x128xf32, #tpu.memory_space<vmem>>, vector<1x8x128xf32>,
    } else {
    }
    %cst = arith.constant 0.000000e+00 : f32
    %3 = vector.broadcast %cst : f32 to vector<8x128xf32>
    %c0_i32_1 = arith.constant 0 : i32
    %c16_i32 = arith.constant 16 : i32
    %4 = arith.muli %c0_i32_1, %c16_i32 : i32
    %5 = tpu.assume_multiple %4, 16 : i32
    %6 = arith.index_cast %5 : i32 to index
    %c0 = arith.constant 0 : index
    %7 = vector.load %arg2[%6, %c0] : memref<16x128xf32, #tpu.memory_space<vmem>>, vector<16x128xf32>
    %8 = arith.index_cast %5 : i32 to index
    %c0_2 = arith.constant 0 : index
    %9 = vector.load %arg3[%8, %c0_2] : memref<16x128xf32, #tpu.memory_space<vmem>>, vector<16x128xf32>
    %10 = arith.subf %9, %7 : vector<16x128xf32>
    %cst_3 = arith.constant 0.000000e+00 : f32
    %11 = vector.broadcast %cst_3 : f32 to vector<16x128xf32>
    %12 = arith.maximumf %10, %11 : vector<16x128xf32>
    %13 = vector.shape_cast %12 : vector<16x128xf32> to vector<2x8x128xf32>
    %cst_4 = arith.constant dense<0.000000e+00> : vector<8x128xf32>
    %14 = vector.multi_reduction <add>, %13, %cst_4 [0] : vector<2x8x128xf32> to vector<8x128xf32>
    %15 = arith.addf %3, %14 : vector<8x128xf32>
    %c1_i32 = arith.constant 1 : i32
    %c0_5 = arith.constant 0 : index
    %c0_6 = arith.constant 0 : index
    %c0_7 = arith.constant 0 : index
    %16 = vector.load %arg4[%c0_5, %c0_6, %c0_7] : memref<1x8x128xf32, #tpu.memory_space<vmem>>, vector<1x8x128xf32>
    %17 = vector.shape_cast %16 : vector<1x8x128xf32> to vector<8x128xf32>
    %18 = arith.addf %17, %15 : vector<8x128xf32>
    %c0_8 = arith.constant 0 : index
    %c0_9 = arith.constant 0 : index
    %c0_10 = arith.constant 0 : index
    %19 = vector.load %arg4[%c0_8, %c0_9, %c0_10] : memref<1x8x128xf32, #tpu.memory_space<vmem>>, vector<1x8x128xf32>
    %20 = vector.shape_cast %19 : vector<1x8x128xf32> to vector<8x128xf32>
    %21 = vector.shape_cast %18 : vector<8x128xf32> to vector<1x8x128xf32>
    tpu.vector_store %arg4[%c0_8, %c0_9, %c0_10], %21 {strides = array<i32>} : memref<1x8x128xf32, #tpu.memory_space<vmem>>, vector<1x8x128xf32>,
    return
  }
  func.func @transform_0(%arg0: i32, %arg1: i32) -> (i32, i32) {
    %c1_i32 = arith.constant 1 : i32
    %0 = arith.muli %arg0, %c1_i32 : i32
    %1 = arith.addi %0, %arg1 : i32
    %c0_i32 = arith.constant 0 : i32
    %c0_i32_0 = arith.constant 0 : i32
    return %1, %c0_i32 : i32, i32
  }
  func.func @transform_1(%arg0: i32, %arg1: i32) -> (i32, i32) {
    %c1_i32 = arith.constant 1 : i32
    %0 = arith.muli %arg0, %c1_i32 : i32
    %1 = arith.addi %0, %arg1 : i32
    %c0_i32 = arith.constant 0 : i32
    %c0_i32_0 = arith.constant 0 : i32
    return %1, %c0_i32 : i32, i32
  }
  func.func @transform_2(%arg0: i32, %arg1: i32) -> (i32, i32, i32) {
    %c0_i32 = arith.constant 0 : i32
    %c0_i32_0 = arith.constant 0 : i32
    %c0_i32_1 = arith.constant 0 : i32
    return %arg0, %c0_i32, %c0_i32_0 : i32, i32, i32
  }
}

</mosaic_0001>

<llo_original>
// kernel: tpu_custom_call.1
$region0: #{tpu_custom_call.1}
  #allocation0 [shape = 'u32[]', space=smem, size = 0x4, offset = 0x4, fixed_abs, tag = 'smem constant byte address 0x4 - core index']
  #allocation1 [shape = 'u32[144,128]{1,0:T(1,128)}', space=vmem, size = 0x12000, scoped, tag = 'internal scratch']
  %s0 = inlined_call_operand.hbm [shape: f32[16,128], index: 0, kind: input, shape index: {}]
  %s1 = inlined_call_operand.hbm [shape: f32[16,128], index: 1, kind: input, shape index: {}]
  %s2 = inlined_call_operand.hbm [shape: f32[1,8,128], index: 2, kind: output, shape index: {}]
  %s3 = sld [smem:[#allocation0]]
  $region30: #{tpu_custom_call.1} parent=0
    _
  %s5 = ssub.s32 1, %s3
  %s6 = scalar_select 0, %s5, %s3
  $region1: #{tpu_custom_call.1} parent=0
    #allocation2 [shape = 'u8[8192]{0}', space=vmem, size = 0x2000, scoped, tag = 'input window, operand 0, single buffered']
    #allocation3 [shape = 's32[1]{0}', space=sflag, size = 0x4, scoped, tag = 'scoped memory for tpu_custom_call.1']
    #allocation4 [shape = 's32[1]{0}', space=sflag, size = 0x4, scoped, tag = 'scoped memory for tpu_custom_call.1']
    #allocation5 [shape = 'u8[8192]{0}', space=vmem, size = 0x2000, scoped, tag = 'input window, operand 1, single buffered']
    #allocation6 [shape = 's32[1]{0}', space=sflag, size = 0x4, scoped, tag = 'scoped memory for tpu_custom_call.1']
    #allocation7 [shape = 'u8[4096]{0}', space=vmem, size = 0x1000, scoped, tag = 'output window, operand 0, single buffered']
    %7 = vsyncpa [#allocation3], 0
    %8 = vsyncpa [#allocation6], 0
    %9 = vsyncpa [#allocation4], 0
    // Predicated region
    $region2: #{tpu_custom_call.1} parent=1 // pred_check
      _
    $region3: #{tpu_custom_call.1} parent=1 // pred_check_branch
      %11 = sbr.rel (0) target = $region5
    $region4: #{tpu_custom_call.1} parent=1 // pred_region
      %s12 = sadd.s32 0, 0
      %s13 = smul.u32 2, %s12
      %s15 = ssub.s32 256, 256
      %16 = vsyncadd [#allocation3], %s15
      %s17 = smul.addr %s13, 128
      %s18 = scalar_lea.hbm %s0, %s17
      %s19 = sshll.u32 [#allocation2], 4
      %s20 = int_to_ptr.vmem [resolvable:$true] %s19
      %25 = dma.hbm_to_vmem [thread:$0]  %s18, 256, %s20, [#allocation3], 128, 128, 8
    $region5: #{tpu_custom_call.1} parent=1 // pred_fallthru
      _
    // Predicated region
    $region6: #{tpu_custom_call.1} parent=1 // pred_check
      _
    $region7: #{tpu_custom_call.1} parent=1 // pred_check_branch
      %27 = sbr.rel (0) target = $region9
    $region8: #{tpu_custom_call.1} parent=1 // pred_region
      %s28 = sadd.s32 0, 0
      %s29 = smul.u32 2, %s28
      %s31 = ssub.s32 256, 256
      %32 = vsyncadd [#allocation6], %s31
      %s33 = smul.addr %s29, 128
      %s34 = scalar_lea.hbm %s1, %s33
      %s35 = sshll.u32 [#allocation5], 4
      %s36 = int_to_ptr.vmem [resolvable:$true] %s35
      %41 = dma.hbm_to_vmem [thread:$0]  %s34, 256, %s36, [#allocation6], 128, 128, 8
    $region9: #{tpu_custom_call.1} parent=1 // pred_fallthru
      _
    // Predicated region
    $region10: #{tpu_custom_call.1} parent=1 // pred_check
      _
    $region11: #{tpu_custom_call.1} parent=1 // pred_check_branch
      %43 = sbr.rel (0) target = $region13
    $region12: #{tpu_custom_call.1} parent=1 // pred_region
      %44 = dma.done [#allocation3], 256
    $region13: #{tpu_custom_call.1} parent=1 // pred_fallthru
      _
    // Predicated region
    $region14: #{tpu_custom_call.1} parent=1 // pred_check
      _
    $region15: #{tpu_custom_call.1} parent=1 // pred_check_branch
      %46 = sbr.rel (0) target = $region17
    $region16: #{tpu_custom_call.1} parent=1 // pred_region
      %47 = dma.done [#allocation6], 256
    $region17: #{tpu_custom_call.1} parent=1 // pred_fallthru
      _
    %s48 = sadd.s32 0, 0
    %s49 = smul.u32 2, %s48
    %s50 = sadd.s32 0, 0
    %s51 = smul.u32 2, %s50
    %p52 = scmp.eq.s32.totalorder 0, 0
    // Predicated region
    $region18: #{tpu_custom_call.1} parent=1 // pred_check
      %p53 = pneg %p52
    $region19: #{tpu_custom_call.1} parent=1 // pred_check_branch
      %55 = sbr.rel (%p53) target = $region21
    $region20: #{tpu_custom_call.1} parent=1 // pred_region
      %56 = vst [vmem:[#allocation7] sm:$0xff] 0.0
    $region21: #{tpu_custom_call.1} parent=1 // pred_fallthru
      _
    %v57 = vld [vmem:[#allocation2] sm:$0xff]
    %v58 = vld [vmem:[#allocation2 + $0x8] sm:$0xff]
    %v59 = vld [vmem:[#allocation5] sm:$0xff]
    %v60 = vld [vmem:[#allocation5 + $0x8] sm:$0xff]
    %v61 = vsub.f32 %v59, %v57
    %v62 = vsub.f32 %v60, %v58
    %v63 = vmax.f32 %v61, 0.0
    %v64 = vmax.f32 %v62, 0.0
    %v65 = vadd.f32 %v63, %v64
    %v66 = vadd.f32 %v65, 0.0
    %v67 = vld [vmem:[#allocation7] sm:$0xff]
    %v68 = vadd.f32 %v67, %v66
    %69 = vst [vmem:[#allocation7] sm:$0xff] %v68
    // Predicated region
    $region22: #{tpu_custom_call.1} parent=1 // pred_check
      _
    $region23: #{tpu_custom_call.1} parent=1 // pred_check_branch
      %71 = sbr.rel (0) target = $region25
    $region24: #{tpu_custom_call.1} parent=1 // pred_region
      %s73 = ssub.s32 128, 128
      %74 = vsyncadd [#allocation4], %s73
      %s76 = sshll.u32 [#allocation7], 4
      %s77 = int_to_ptr.vmem [resolvable:$true] %s76
      %79 = dma.vmem_to_hbm [thread:$0]  %s77, 128, %s2, [#allocation4]
    $region25: #{tpu_custom_call.1} parent=1 // pred_fallthru
      _
    // Predicated region
    $region26: #{tpu_custom_call.1} parent=1 // pred_check
      _
    $region27: #{tpu_custom_call.1} parent=1 // pred_check_branch
      %81 = sbr.rel (0) target = $region29
    $region28: #{tpu_custom_call.1} parent=1 // pred_region
      %82 = dma.done [#allocation4], 128
    $region29: #{tpu_custom_call.1} parent=1 // pred_fallthru
      _
    %83 = vsyncpa [#allocation3], 1
    %84 = vsyncpa [#allocation6], 1
    %85 = vsyncpa [#allocation4], 1

</llo_original>
